<compile_context>
chip_gen: v7x
topology: tpu7x:2x2x1
jax: 0.10.0
libtpu: 0.0.40
codegen_flags: <defaults>
</compile_context>

<pallas_src>
import functools

import jax
import jax.numpy as jnp
import numpy as np
from jax.experimental import pallas as pl
from jax.experimental.pallas import tpu as pltpu

INPUT_SIZE = 5
OUTPUT_SIZE = 2
N_PAD = 128  # pad out_features up to one full lane group -> unmasked stores


def linear_kernel(x_ref, w_ref, b_ref, o_ref):
    # x_ref: (TB, K) f32    -- batch tile
    # w_ref: (K, N_PAD) f32 -- resident, pre-transposed + zero-padded weight
    # b_ref: (1, N_PAD) f32 -- resident, zero-padded bias
    # o_ref: (TB, N_PAD) f32 -- lane-dense output tile
    x = x_ref[...]
    w = w_ref[...]
    b = b_ref[...]
    k_dim = x.shape[1]  # static (5) -> loop fully unrolled at trace time

    # VPU FMA contraction: acc = b + sum_k x[:, k] * w[k, :]
    acc = b + x[:, 0:1] * w[0:1, :]
    for k in range(1, k_dim):
        acc = acc + x[:, k : k + 1] * w[k : k + 1, :]

    o_ref[...] = acc.astype(o_ref.dtype)


def prepare_params(weight, bias):
    """Hoisted, one-time parameter prep: transpose + zero-pad to lane width."""
    out_f, in_f = weight.shape
    w_pad = jnp.zeros((in_f, N_PAD), weight.dtype).at[:, :out_f].set(weight.T)
    b_pad = jnp.zeros((1, N_PAD), bias.dtype).at[0, :out_f].set(bias)
    return w_pad, b_pad


def _batch_tile(B):
    # Largest multiple-of-8 tile (<=512 rows) that divides B; otherwise use the
    # full batch as a single block (legal because it equals the array extent).
    for tb in (512, 256, 128, 64, 32, 16, 8):
        if B >= tb and B % tb == 0:
            return tb
    return B


@functools.partial(jax.jit, static_argnames=("out_features",))
def linear_forward(x, w_pad, b_pad, out_features):
    """x: (B, in_features) f32; w_pad: (in, N_PAD); b_pad: (1, N_PAD)."""
    B, in_f = x.shape
    tb = _batch_tile(B)
    grid = (pl.cdiv(B, tb),)

    y_pad = pl.pallas_call(
        linear_kernel,
        out_shape=jax.ShapeDtypeStruct((B, N_PAD), x.dtype),
        grid_spec=pltpu.PrefetchScalarGridSpec(
            num_scalar_prefetch=0,
            grid=grid,
            in_specs=[
                # batch tile iterates over the grid
                pl.BlockSpec((tb, in_f), lambda i: (i, 0)),
                # weight + bias: full blocks, resident across all grid steps
                pl.BlockSpec((in_f, N_PAD), lambda i: (0, 0)),
                pl.BlockSpec((1, N_PAD), lambda i: (0, 0)),
            ],
            out_specs=pl.BlockSpec((tb, N_PAD), lambda i: (i, 0)),
        ),
        compiler_params=pltpu.CompilerParams(
            dimension_semantics=("parallel",),
        ),
    )(x, w_pad, b_pad)

    # Strip the lane padding back down to the true out_features.
    return y_pad[:, :out_features]


if __name__ == "__main__":
    key = jax.random.PRNGKey(0)
    k_x, k_w, k_b = jax.random.split(key, 3)

    # Small shapes consistent with the module: batch=8, input_size=5, output_size=2.
    B = 8
    x = jax.random.normal(k_x, (B, INPUT_SIZE), dtype=jnp.float32)

    # Deterministic parameter init (mimics nn.Linear's uniform(-1/sqrt(in), 1/sqrt(in))).
    bound = 1.0 / np.sqrt(INPUT_SIZE)
    weight = jax.random.uniform(
        k_w, (OUTPUT_SIZE, INPUT_SIZE), dtype=jnp.float32, minval=-bound, maxval=bound
    )
    bias = jax.random.uniform(
        k_b, (OUTPUT_SIZE,), dtype=jnp.float32, minval=-bound, maxval=bound
    )

    # One-time parameter prep (transpose + lane padding), hoisted out of forward.
    w_pad, b_pad = prepare_params(weight, bias)

    out = linear_forward(x, w_pad, b_pad, OUTPUT_SIZE)
    out = jax.block_until_ready(out)

    # Mirror the module's print of input/output sizes (host-side, like PyTorch's print).
    print("  In Model: input size", tuple(x.shape), "output size", tuple(out.shape))

    # Correctness check against plain JAX reference.
    ref = x @ weight.T + bias
    np.testing.assert_allclose(np.asarray(out), np.asarray(ref), rtol=1e-5, atol=1e-5)

    print("KERNEL_OK")
</pallas_src>

<mosaic_0001>
module attributes {stable_mosaic.version = 11 : i64} {
  func.func @linear_kernel(%arg0: i32, %arg1: memref<8x5xf32, #tpu.memory_space<vmem>>, %arg2: memref<5x128xf32, #tpu.memory_space<vmem>>, %arg3: memref<1x128xf32, #tpu.memory_space<vmem>>, %arg4: memref<8x128xf32, #tpu.memory_space<vmem>>) attributes {dimension_semantics = [#tpu.dimension_semantics<parallel>], iteration_bounds = array<i64: 1>, scalar_prefetch = 0 : i64, scratch_operands = 0 : i64, tpu.core_type = #tpu.core_type<tc>, window_params = [{transform_indices = @transform_0, window_bounds = array<i64: 8, 5>}, {pipeline_mode = #tpu.pipeline_mode<synchronous>, transform_indices = @transform_1, window_bounds = array<i64: 5, 128>}, {pipeline_mode = #tpu.pipeline_mode<synchronous>, transform_indices = @transform_2, window_bounds = array<i64: 1, 128>}, {transform_indices = @transform_3, window_bounds = array<i64: 8, 128>}]} {
    %c0 = arith.constant 0 : index
    %c0_0 = arith.constant 0 : index
    %0 = vector.load %arg1[%c0, %c0_0] : memref<8x5xf32, #tpu.memory_space<vmem>>, vector<8x5xf32>
    %c0_1 = arith.constant 0 : index
    %c0_2 = arith.constant 0 : index
    %1 = vector.load %arg2[%c0_1, %c0_2] : memref<5x128xf32, #tpu.memory_space<vmem>>, vector<5x128xf32>
    %c0_3 = arith.constant 0 : index
    %c0_4 = arith.constant 0 : index
    %2 = vector.load %arg3[%c0_3, %c0_4] : memref<1x128xf32, #tpu.memory_space<vmem>>, vector<1x128xf32>
    %3 = vector.extract_strided_slice %0 {offsets = [0, 0], sizes = [8, 1], strides = [1, 1]} : vector<8x5xf32> to vector<8x1xf32>
    %4 = vector.extract_strided_slice %1 {offsets = [0, 0], sizes = [1, 128], strides = [1, 1]} : vector<5x128xf32> to vector<1x128xf32>
    %5 = vector.broadcast %3 : vector<8x1xf32> to vector<8x128xf32>
    %6 = vector.broadcast %4 : vector<1x128xf32> to vector<8x128xf32>
    %7 = arith.mulf %5, %6 : vector<8x128xf32>
    %8 = vector.broadcast %2 : vector<1x128xf32> to vector<8x128xf32>
    %9 = arith.addf %8, %7 : vector<8x128xf32>
    %10 = vector.extract_strided_slice %0 {offsets = [0, 1], sizes = [8, 1], strides = [1, 1]} : vector<8x5xf32> to vector<8x1xf32>
    %11 = vector.extract_strided_slice %1 {offsets = [1, 0], sizes = [1, 128], strides = [1, 1]} : vector<5x128xf32> to vector<1x128xf32>
    %12 = vector.broadcast %10 : vector<8x1xf32> to vector<8x128xf32>
    %13 = vector.broadcast %11 : vector<1x128xf32> to vector<8x128xf32>
    %14 = arith.mulf %12, %13 : vector<8x128xf32>
    %15 = arith.addf %9, %14 : vector<8x128xf32>
    %16 = vector.extract_strided_slice %0 {offsets = [0, 2], sizes = [8, 1], strides = [1, 1]} : vector<8x5xf32> to vector<8x1xf32>
    %17 = vector.extract_strided_slice %1 {offsets = [2, 0], sizes = [1, 128], strides = [1, 1]} : vector<5x128xf32> to vector<1x128xf32>
    %18 = vector.broadcast %16 : vector<8x1xf32> to vector<8x128xf32>
    %19 = vector.broadcast %17 : vector<1x128xf32> to vector<8x128xf32>
    %20 = arith.mulf %18, %19 : vector<8x128xf32>
    %21 = arith.addf %15, %20 : vector<8x128xf32>
    %22 = vector.extract_strided_slice %0 {offsets = [0, 3], sizes = [8, 1], strides = [1, 1]} : vector<8x5xf32> to vector<8x1xf32>
    %23 = vector.extract_strided_slice %1 {offsets = [3, 0], sizes = [1, 128], strides = [1, 1]} : vector<5x128xf32> to vector<1x128xf32>
    %24 = vector.broadcast %22 : vector<8x1xf32> to vector<8x128xf32>
    %25 = vector.broadcast %23 : vector<1x128xf32> to vector<8x128xf32>
    %26 = arith.mulf %24, %25 : vector<8x128xf32>
    %27 = arith.addf %21, %26 : vector<8x128xf32>
    %28 = vector.extract_strided_slice %0 {offsets = [0, 4], sizes = [8, 1], strides = [1, 1]} : vector<8x5xf32> to vector<8x1xf32>
    %29 = vector.extract_strided_slice %1 {offsets = [4, 0], sizes = [1, 128], strides = [1, 1]} : vector<5x128xf32> to vector<1x128xf32>
    %30 = vector.broadcast %28 : vector<8x1xf32> to vector<8x128xf32>
    %31 = vector.broadcast %29 : vector<1x128xf32> to vector<8x128xf32>
    %32 = arith.mulf %30, %31 : vector<8x128xf32>
    %33 = arith.addf %27, %32 : vector<8x128xf32>
    %c0_5 = arith.constant 0 : index
    %c0_6 = arith.constant 0 : index
    %34 = vector.load %arg4[%c0_5, %c0_6] : memref<8x128xf32, #tpu.memory_space<vmem>>, vector<8x128xf32>
    tpu.vector_store %arg4[%c0_5, %c0_6], %33 {strides = array<i32>} : memref<8x128xf32, #tpu.memory_space<vmem>>, vector<8x128xf32>,
    return
  }
  func.func @transform_0(%arg0: i32) -> (i32, i32) {
    %c0_i32 = arith.constant 0 : i32
    %c0_i32_0 = arith.constant 0 : i32
    return %arg0, %c0_i32 : i32, i32
  }
  func.func @transform_1(%arg0: i32) -> (i32, i32) {
    %c0_i32 = arith.constant 0 : i32
    %c0_i32_0 = arith.constant 0 : i32
    %c0_i32_1 = arith.constant 0 : i32
    return %c0_i32, %c0_i32_0 : i32, i32
  }
  func.func @transform_2(%arg0: i32) -> (i32, i32) {
    %c0_i32 = arith.constant 0 : i32
    %c0_i32_0 = arith.constant 0 : i32
    %c0_i32_1 = arith.constant 0 : i32
    return %c0_i32, %c0_i32_0 : i32, i32
  }
  func.func @transform_3(%arg0: i32) -> (i32, i32) {
    %c0_i32 = arith.constant 0 : i32
    %c0_i32_0 = arith.constant 0 : i32
    return %arg0, %c0_i32 : i32, i32
  }
}

</mosaic_0001>

<llo_original>
// kernel: linear_forward.1
$region0: #{linear_forward.1}
  #allocation0 [shape = 'u32[]', space=smem, size = 0x4, offset = 0x4, fixed_abs, tag = 'smem constant byte address 0x4 - core index']
  #allocation1 [shape = 'u32[144,128]{1,0:T(1,128)}', space=vmem, size = 0x12000, scoped, tag = 'internal scratch']
  %s0 = inlined_call_operand.hbm [shape: f32[8,5], index: 0, kind: input, shape index: {}]
  %s1 = inlined_call_operand.hbm [shape: f32[5,128], index: 1, kind: input, shape index: {}]
  %s2 = inlined_call_operand.vmem [shape: f32[1,128], index: 2, kind: input, shape index: {}]
  %s3 = inlined_call_operand.vmem [shape: f32[8,128], index: 3, kind: output, shape index: {}]
  %s4 = sld [smem:[#allocation0]]
  $region30: #{linear_forward.1} parent=0
    _
  %s6 = ssub.s32 1, %s4
  %s7 = scalar_select 0, %s6, %s4
  $region1: #{linear_forward.1} parent=0
    #allocation2 [shape = 'u8[4096]{0}', space=vmem, size = 0x1000, scoped, tag = 'input window, operand 0, single buffered']
    #allocation3 [shape = 's32[1]{0}', space=sflag, size = 0x4, scoped, tag = 'scoped memory for linear_forward.1']
    #allocation4 [shape = 'u8[4096]{0}', space=vmem, size = 0x1000, scoped, tag = 'input window, operand 1, single buffered']
    #allocation5 [shape = 's32[1]{0}', space=sflag, size = 0x4, scoped, tag = 'scoped memory for linear_forward.1']
    %8 = vsyncpa [#allocation3], 0
    %9 = vsyncpa [#allocation5], 0
    // Predicated region
    $region2: #{linear_forward.1} parent=1 // pred_check
      _
    $region3: #{linear_forward.1} parent=1 // pred_check_branch
      %11 = sbr.rel (0) target = $region5
    $region4: #{linear_forward.1} parent=1 // pred_region
      %s13 = ssub.s32 128, 128
      %14 = vsyncadd [#allocation3], %s13
      %s16 = sshll.u32 [#allocation2], 4
      %s17 = int_to_ptr.vmem [resolvable:$true] %s16
      %19 = dma.hbm_to_vmem [thread:$0]  %s0, 128, %s17, [#allocation3]
    $region5: #{linear_forward.1} parent=1 // pred_fallthru
      _
    // Predicated region
    $region6: #{linear_forward.1} parent=1 // pred_check
      _
    $region7: #{linear_forward.1} parent=1 // pred_check_branch
      %21 = sbr.rel (0) target = $region9
    $region8: #{linear_forward.1} parent=1 // pred_region
      %s23 = ssub.s32 128, 128
      %24 = vsyncadd [#allocation5], %s23
      %s26 = sshll.u32 [#allocation4], 4
      %s27 = int_to_ptr.vmem [resolvable:$true] %s26
      %29 = dma.hbm_to_vmem [thread:$0]  %s1, 128, %s27, [#allocation5]
    $region9: #{linear_forward.1} parent=1 // pred_fallthru
      _
    // Predicated region
    $region10: #{linear_forward.1} parent=1 // pred_check
      _
    $region11: #{linear_forward.1} parent=1 // pred_check_branch
      %31 = sbr.rel (0) target = $region13
    $region12: #{linear_forward.1} parent=1 // pred_region
      _
    $region13: #{linear_forward.1} parent=1 // pred_fallthru
      _
    // Predicated region
    $region14: #{linear_forward.1} parent=1 // pred_check
      _
    $region15: #{linear_forward.1} parent=1 // pred_check_branch
      %33 = sbr.rel (0) target = $region17
    $region16: #{linear_forward.1} parent=1 // pred_region
      %34 = dma.done [#allocation3], 128
    $region17: #{linear_forward.1} parent=1 // pred_fallthru
      _
    // Predicated region
    $region18: #{linear_forward.1} parent=1 // pred_check
      _
    $region19: #{linear_forward.1} parent=1 // pred_check_branch
      %36 = sbr.rel (0) target = $region21
    $region20: #{linear_forward.1} parent=1 // pred_region
      %37 = dma.done [#allocation5], 128
    $region21: #{linear_forward.1} parent=1 // pred_fallthru
      _
    %v38 = vld [vmem:[#allocation2] sm:$0xff]
    %v39 = vld [vmem:[#allocation4] sm:$0x1f]
    %v40 = vld [vmem:[%s2] sm:$0x1]
    %42 = vset.pattern.permute.xlu0 0
    %43 = vperm.xlu0 %42, %v38
    %v44 = vpop.permute.xlu0 %43
    %v46 = vlaneseq
    %v47 = vshrl.u32 %v46, 7
    %v48 = vsub.s32 0, %v47
    %v49 = vrot.slane %v39, %v48
    %v50 = vmul.f32 %v44, %v49
    %v52 = vlaneseq
    %v53 = vshrl.u32 %v52, 7
    %v54 = vsub.s32 0, %v53
    %v55 = vrot.slane %v40, %v54
    %v57 = vadd.f32 %v55, %v50
    %58 = vset.pattern.permute.xlu0 1
    %59 = vperm.xlu0 %58, %v38
    %v60 = vpop.permute.xlu0 %59
    %v62 = vlaneseq
    %v63 = vshrl.u32 %v62, 7
    %v64 = vsub.s32 1, %v63
    %v65 = vrot.slane %v39, %v64
    %v66 = vmul.f32 %v60, %v65
    %v67 = vadd.f32 %v57, %v66
    %68 = vset.pattern.permute.xlu0 2
    %69 = vperm.xlu0 %68, %v38
    %v70 = vpop.permute.xlu0 %69
    %v72 = vlaneseq
    %v73 = vshrl.u32 %v72, 7
    %v74 = vsub.s32 2, %v73
    %v75 = vrot.slane %v39, %v74
    %v76 = vmul.f32 %v70, %v75
    %v77 = vadd.f32 %v67, %v76
    %78 = vset.pattern.permute.xlu0 3
    %79 = vperm.xlu0 %78, %v38
    %v80 = vpop.permute.xlu0 %79
    %v82 = vlaneseq
    %v83 = vshrl.u32 %v82, 7
    %v84 = vsub.s32 3, %v83
    %v85 = vrot.slane %v39, %v84
    %v86 = vmul.f32 %v80, %v85
    %v87 = vadd.f32 %v77, %v86
    %88 = vset.pattern.permute.xlu0 4
    %89 = vperm.xlu0 %88, %v38
    %v90 = vpop.permute.xlu0 %89
    %v92 = vlaneseq
    %v93 = vshrl.u32 %v92, 7
    %v94 = vsub.s32 4, %v93
    %v95 = vrot.slane %v39, %v94
    %v96 = vmul.f32 %v90, %v95
    %v97 = vadd.f32 %v87, %v96
    %98 = vst [vmem:[%s3] sm:$0xff] %v97
    // Predicated region
    $region22: #{linear_forward.1} parent=1 // pred_check
      _
    $region23: #{linear_forward.1} parent=1 // pred_check_branch
      %100 = sbr.rel (0) target = $region25
    $region24: #{linear_forward.1} parent=1 // pred_region
      _
    $region25: #{linear_forward.1} parent=1 // pred_fallthru
      _
    // Predicated region
    $region26: #{linear_forward.1} parent=1 // pred_check
      _
    $region27: #{linear_forward.1} parent=1 // pred_check_branch
      %102 = sbr.rel (0) target = $region29
    $region28: #{linear_forward.1} parent=1 // pred_region
      _
    $region29: #{linear_forward.1} parent=1 // pred_fallthru
      _
    %103 = vsyncpa [#allocation3], 1
    %104 = vsyncpa [#allocation5], 1

</llo_original>
